<compile_context>
chip_gen: v7x
topology: tpu7x:2x2x1
jax: 0.10.0
libtpu: 0.0.40
codegen_flags: <defaults>
</compile_context>

<pallas_src>
import jax
import jax.numpy as jnp
from jax.experimental import pallas as pl
from jax.experimental.pallas import tpu as pltpu


def _round_up(n, m):
    return ((n + m - 1) // m) * m


def resnetfc_kernel(x_ref, pre_w_ref, pre_b_ref, res_w_ref, res_b_ref,
                    out_w_ref, out_b_ref, out_ref):
    """One batch tile of the whole forward pass.

    Shapes seen by the kernel:
      x:      [TB, IN]         (f32)
      pre_w:  [IN, H] (bf16),  pre_b: [1, H] (f32)
      res_w:  [L, H, H] (bf16), res_b: [L, H] (f32)
      out_w:  [H, 128] (bf16)  = pad(concat([emb_w, emb_w @ post_w], axis=1))
      out_b:  [1, 128] (f32)   = pad(concat([emb_b, emb_b @ post_w + post_b]))
      out:    [TB, 128]        (f32)  -> wrapper slices emb / logit out of it
    """
    # pre_layer + activation (MXU in bf16, f32 accumulation, VPU math in f32)
    h = jnp.dot(x_ref[...].astype(jnp.bfloat16), pre_w_ref[...],
                preferred_element_type=jnp.float32) + pre_b_ref[...]
    h = jnp.maximum(h, 0.0)

    # residual blocks: h = h + relu(Linear(h))
    res_b = res_b_ref[...]                       # [L, H] f32, loaded once
    num_layers = res_w_ref.shape[0]              # static
    # TODO(synk): for large `layers`, switch to lax.fori_loop(..., unroll=True)
    # to bound vreg live ranges; at L=2 a static unroll is optimal.
    for l in range(num_layers):
        z = jnp.dot(h.astype(jnp.bfloat16), res_w_ref[l],
                    preferred_element_type=jnp.float32) + res_b[l:l + 1, :]
        h = h + jnp.maximum(z, 0.0)

    # single lane-dense output projection: [TB, 128] = [emb | logit | pad]
    out = jnp.dot(h.astype(jnp.bfloat16), out_w_ref[...],
                  preferred_element_type=jnp.float32) + out_b_ref[...]
    out_ref[...] = out.astype(out_ref.dtype)


def resnetfc_forward(x, params, tb=256):
    """Gridded pallas_call: batch tiles stream, weights stay resident in VMEM."""
    B, IN = x.shape
    H = params["pre_w"].shape[1]
    E = params["emb_w"].shape[1]
    O = params["post_w"].shape[1]
    L = params["res_w"].shape[0]

    # --- fold post layer into the embedding projection, make it lane-dense ---
    emb_w = params["emb_w"]                      # [H, E] bf16
    post_w = params["post_w"]                    # [E, O] bf16
    fused_w = jnp.dot(emb_w, post_w, preferred_element_type=jnp.float32)   # [H, O]
    fused_b = jnp.dot(params["emb_b"], post_w.astype(jnp.float32)) + params["post_b"]
    comb_w = jnp.concatenate([emb_w.astype(jnp.float32), fused_w], axis=1)  # [H, E+O]
    comb_b = jnp.concatenate([params["emb_b"], fused_b], axis=1)            # [1, E+O]
    OUT_W = _round_up(E + O, 128)
    pad_lanes = OUT_W - (E + O)
    comb_w = jnp.pad(comb_w, ((0, 0), (0, pad_lanes))).astype(jnp.bfloat16)
    comb_b = jnp.pad(comb_b, ((0, 0), (0, pad_lanes)))                      # f32

    # --- batch tiling ---
    TB = _round_up(min(tb, _round_up(B, 8)), 8)
    B_pad = _round_up(B, TB)
    if B_pad != B:
        x = jnp.pad(x, ((0, B_pad - B), (0, 0)))
    nb = B_pad // TB

    const2 = lambda i: (0, 0)
    const3 = lambda i: (0, 0, 0)

    out = pl.pallas_call(
        resnetfc_kernel,
        out_shape=jax.ShapeDtypeStruct((B_pad, OUT_W), jnp.float32),
        grid=(nb,),
        in_specs=[
            pl.BlockSpec((TB, IN), lambda i: (i, 0)),   # streamed activations
            pl.BlockSpec((IN, H), const2),              # weights: resident
            pl.BlockSpec((1, H), const2),
            pl.BlockSpec((L, H, H), const3),
            pl.BlockSpec((L, H), const2),
            pl.BlockSpec((H, OUT_W), const2),
            pl.BlockSpec((1, OUT_W), const2),
        ],
        out_specs=pl.BlockSpec((TB, OUT_W), lambda i: (i, 0)),
        compiler_params=pltpu.CompilerParams(
            dimension_semantics=("parallel",)),
    )(x, params["pre_w"], params["pre_b"], params["res_w"], params["res_b"],
      comb_w, comb_b)

    emb = out[:B, :E]
    logit = out[:B, E:E + O]
    return logit, emb


def init_params(key, input_size, hidden_size, embedding_size, output_size, layers):
    """Deterministic synthetic parameters. Matmul weights stored bf16
    (halves VMEM/HBM traffic), biases kept f32 for the VPU path."""
    ks = jax.random.split(key, 4)

    def lin(k, fan_in, fan_out):
        kw, kb = jax.random.split(k)
        bound = 1.0 / jnp.sqrt(fan_in)
        w = jax.random.uniform(kw, (fan_in, fan_out), jnp.float32, -bound, bound)
        b = jax.random.uniform(kb, (1, fan_out), jnp.float32, -bound, bound)
        return w, b

    pre_w, pre_b = lin(ks[0], input_size, hidden_size)

    res_ws, res_bs = [], []
    kres = jax.random.split(ks[1], layers)
    for l in range(layers):
        w, b = lin(kres[l], hidden_size, hidden_size)
        res_ws.append(w)
        res_bs.append(b)
    res_w = jnp.stack(res_ws, axis=0)        # [L, H, H]
    res_b = jnp.concatenate(res_bs, axis=0)  # [L, H]  (flat, no per-layer sublane pad)

    emb_w, emb_b = lin(ks[2], hidden_size, embedding_size)
    post_w, post_b = lin(ks[3], embedding_size, output_size)

    bf16 = jnp.bfloat16
    return dict(pre_w=pre_w.astype(bf16), pre_b=pre_b,
                res_w=res_w.astype(bf16), res_b=res_b,
                emb_w=emb_w.astype(bf16), emb_b=emb_b,
                post_w=post_w.astype(bf16), post_b=post_b)


def reference_forward(x, p):
    """Pure-JAX f32 reference of the PyTorch forward (un-fused, sequential)."""
    f32 = lambda a: a.astype(jnp.float32)
    h = jnp.maximum(x @ f32(p["pre_w"]) + p["pre_b"], 0.0)
    for l in range(p["res_w"].shape[0]):
        h = h + jnp.maximum(h @ f32(p["res_w"][l]) + p["res_b"][l], 0.0)
    e = h @ f32(p["emb_w"]) + p["emb_b"]
    logit = e @ f32(p["post_w"]) + p["post_b"]
    return logit, e


if __name__ == "__main__":
    B, IN, H, E, O, L = 8, 16, 32, 16, 4, 2

    key = jax.random.PRNGKey(0)
    kx, kp, kx2 = jax.random.split(key, 3)
    params = init_params(kp, IN, H, E, O, L)

    # Small test: one tile.
    x = jax.random.normal(kx, (B, IN), dtype=jnp.float32)
    logit, emb = resnetfc_forward(x, params)
    logit, emb = jax.block_until_ready((logit, emb))
    ref_logit, ref_emb = reference_forward(x, params)
    assert logit.shape == (B, O) and emb.shape == (B, E)
    # bf16 matmul operands + folded post layer -> loosened tolerance vs f32 ref
    assert jnp.allclose(logit, ref_logit, atol=2e-2, rtol=2e-2)
    assert jnp.allclose(emb, ref_emb, atol=2e-2, rtol=2e-2)

    # Larger, non-multiple batch: exercises grid > 1 and row padding.
    B2 = 300
    x2 = jax.random.normal(kx2, (B2, IN), dtype=jnp.float32)
    logit2, emb2 = resnetfc_forward(x2, params, tb=128)
    logit2, emb2 = jax.block_until_ready((logit2, emb2))
    ref_logit2, ref_emb2 = reference_forward(x2, params)
    assert logit2.shape == (B2, O) and emb2.shape == (B2, E)
    assert jnp.allclose(logit2, ref_logit2, atol=2e-2, rtol=2e-2)
    assert jnp.allclose(emb2, ref_emb2, atol=2e-2, rtol=2e-2)

    print("KERNEL_OK")
</pallas_src>

<mosaic_0001>
module attributes {stable_mosaic.version = 11 : i64} {
  func.func @resnetfc_kernel(%arg0: i32, %arg1: memref<8x16xf32, #tpu.memory_space<vmem>>, %arg2: memref<16x32xbf16, #tpu.memory_space<vmem>>, %arg3: memref<1x32xf32, #tpu.memory_space<vmem>>, %arg4: memref<2x32x32xbf16, #tpu.memory_space<vmem>>, %arg5: memref<2x32xf32, #tpu.memory_space<vmem>>, %arg6: memref<32x128xbf16, #tpu.memory_space<vmem>>, %arg7: memref<1x128xf32, #tpu.memory_space<vmem>>, %arg8: memref<8x128xf32, #tpu.memory_space<vmem>>) attributes {dimension_semantics = [#tpu.dimension_semantics<parallel>], iteration_bounds = array<i64: 1>, scalar_prefetch = 0 : i64, scratch_operands = 0 : i64, tpu.core_type = #tpu.core_type<tc>, window_params = [{transform_indices = @transform_0, window_bounds = array<i64: 8, 16>}, {pipeline_mode = #tpu.pipeline_mode<synchronous>, transform_indices = @transform_1, window_bounds = array<i64: 16, 32>}, {pipeline_mode = #tpu.pipeline_mode<synchronous>, transform_indices = @transform_2, window_bounds = array<i64: 1, 32>}, {pipeline_mode = #tpu.pipeline_mode<synchronous>, transform_indices = @transform_3, window_bounds = array<i64: 2, 32, 32>}, {pipeline_mode = #tpu.pipeline_mode<synchronous>, transform_indices = @transform_4, window_bounds = array<i64: 2, 32>}, {pipeline_mode = #tpu.pipeline_mode<synchronous>, transform_indices = @transform_5, window_bounds = array<i64: 32, 128>}, {pipeline_mode = #tpu.pipeline_mode<synchronous>, transform_indices = @transform_6, window_bounds = array<i64: 1, 128>}, {transform_indices = @transform_7, window_bounds = array<i64: 8, 128>}]} {
    %c0 = arith.constant 0 : index
    %c0_0 = arith.constant 0 : index
    %0 = vector.load %arg1[%c0, %c0_0] : memref<8x16xf32, #tpu.memory_space<vmem>>, vector<8x16xf32>
    %1 = arith.truncf %0 : vector<8x16xf32> to vector<8x16xbf16>
    %c0_1 = arith.constant 0 : index
    %c0_2 = arith.constant 0 : index
    %2 = vector.load %arg2[%c0_1, %c0_2] : memref<16x32xbf16, #tpu.memory_space<vmem>>, vector<16x32xbf16>
    %cst = arith.constant dense<0.000000e+00> : vector<8x32xf32>
    %3 = tpu.matmul %1, %2, %cst {dimension_numbers = #tpu.dot_dimension_numbers<[1], [0], [0], [1], [0, 0, 1, 1], [], []>} : vector<8x16xbf16>, vector<16x32xbf16>, vector<8x32xf32> -> vector<8x32xf32>
    %c0_3 = arith.constant 0 : index
    %c0_4 = arith.constant 0 : index
    %4 = vector.load %arg3[%c0_3, %c0_4] : memref<1x32xf32, #tpu.memory_space<vmem>>, vector<1x32xf32>
    %5 = vector.broadcast %4 : vector<1x32xf32> to vector<8x32xf32>
    %6 = arith.addf %3, %5 : vector<8x32xf32>
    %cst_5 = arith.constant 0.000000e+00 : f32
    %7 = vector.broadcast %cst_5 : f32 to vector<8x32xf32>
    %8 = arith.maximumf %6, %7 : vector<8x32xf32>
    %c0_6 = arith.constant 0 : index
    %c0_7 = arith.constant 0 : index
    %9 = vector.load %arg5[%c0_6, %c0_7] : memref<2x32xf32, #tpu.memory_space<vmem>>, vector<2x32xf32>
    %10 = arith.truncf %8 : vector<8x32xf32> to vector<8x32xbf16>
    %c0_8 = arith.constant 0 : index
    %c0_9 = arith.constant 0 : index
    %c0_10 = arith.constant 0 : index
    %11 = vector.load %arg4[%c0_8, %c0_9, %c0_10] : memref<2x32x32xbf16, #tpu.memory_space<vmem>>, vector<1x32x32xbf16>
    %12 = vector.shape_cast %11 : vector<1x32x32xbf16> to vector<32x32xbf16>
    %cst_11 = arith.constant dense<0.000000e+00> : vector<8x32xf32>
    %13 = tpu.matmul %10, %12, %cst_11 {dimension_numbers = #tpu.dot_dimension_numbers<[1], [0], [0], [1], [0, 0, 1, 1], [], []>} : vector<8x32xbf16>, vector<32x32xbf16>, vector<8x32xf32> -> vector<8x32xf32>
    %14 = vector.extract_strided_slice %9 {offsets = [0, 0], sizes = [1, 32], strides = [1, 1]} : vector<2x32xf32> to vector<1x32xf32>
    %15 = vector.broadcast %14 : vector<1x32xf32> to vector<8x32xf32>
    %16 = arith.addf %13, %15 : vector<8x32xf32>
    %cst_12 = arith.constant 0.000000e+00 : f32
    %17 = vector.broadcast %cst_12 : f32 to vector<8x32xf32>
    %18 = arith.maximumf %16, %17 : vector<8x32xf32>
    %19 = arith.addf %8, %18 : vector<8x32xf32>
    %20 = arith.truncf %19 : vector<8x32xf32> to vector<8x32xbf16>
    %c1 = arith.constant 1 : index
    %c0_13 = arith.constant 0 : index
    %c0_14 = arith.constant 0 : index
    %21 = vector.load %arg4[%c1, %c0_13, %c0_14] : memref<2x32x32xbf16, #tpu.memory_space<vmem>>, vector<1x32x32xbf16>
    %22 = vector.shape_cast %21 : vector<1x32x32xbf16> to vector<32x32xbf16>
    %cst_15 = arith.constant dense<0.000000e+00> : vector<8x32xf32>
    %23 = tpu.matmul %20, %22, %cst_15 {dimension_numbers = #tpu.dot_dimension_numbers<[1], [0], [0], [1], [0, 0, 1, 1], [], []>} : vector<8x32xbf16>, vector<32x32xbf16>, vector<8x32xf32> -> vector<8x32xf32>
    %24 = vector.extract_strided_slice %9 {offsets = [1, 0], sizes = [1, 32], strides = [1, 1]} : vector<2x32xf32> to vector<1x32xf32>
    %25 = vector.broadcast %24 : vector<1x32xf32> to vector<8x32xf32>
    %26 = arith.addf %23, %25 : vector<8x32xf32>
    %cst_16 = arith.constant 0.000000e+00 : f32
    %27 = vector.broadcast %cst_16 : f32 to vector<8x32xf32>
    %28 = arith.maximumf %26, %27 : vector<8x32xf32>
    %29 = arith.addf %19, %28 : vector<8x32xf32>
    %30 = arith.truncf %29 : vector<8x32xf32> to vector<8x32xbf16>
    %c0_17 = arith.constant 0 : index
    %c0_18 = arith.constant 0 : index
    %31 = vector.load %arg6[%c0_17, %c0_18] : memref<32x128xbf16, #tpu.memory_space<vmem>>, vector<32x128xbf16>
    %cst_19 = arith.constant dense<0.000000e+00> : vector<8x128xf32>
    %32 = tpu.matmul %30, %31, %cst_19 {dimension_numbers = #tpu.dot_dimension_numbers<[1], [0], [0], [1], [0, 0, 1, 1], [], []>} : vector<8x32xbf16>, vector<32x128xbf16>, vector<8x128xf32> -> vector<8x128xf32>
    %c0_20 = arith.constant 0 : index
    %c0_21 = arith.constant 0 : index
    %33 = vector.load %arg7[%c0_20, %c0_21] : memref<1x128xf32, #tpu.memory_space<vmem>>, vector<1x128xf32>
    %34 = vector.broadcast %33 : vector<1x128xf32> to vector<8x128xf32>
    %35 = arith.addf %32, %34 : vector<8x128xf32>
    %c0_22 = arith.constant 0 : index
    %c0_23 = arith.constant 0 : index
    %36 = vector.load %arg8[%c0_22, %c0_23] : memref<8x128xf32, #tpu.memory_space<vmem>>, vector<8x128xf32>
    tpu.vector_store %arg8[%c0_22, %c0_23], %35 {strides = array<i32>} : memref<8x128xf32, #tpu.memory_space<vmem>>, vector<8x128xf32>,
    return
  }
  func.func @transform_0(%arg0: i32) -> (i32, i32) {
    %c0_i32 = arith.constant 0 : i32
    %c0_i32_0 = arith.constant 0 : i32
    return %arg0, %c0_i32 : i32, i32
  }
  func.func @transform_1(%arg0: i32) -> (i32, i32) {
    %c0_i32 = arith.constant 0 : i32
    %c0_i32_0 = arith.constant 0 : i32
    %c0_i32_1 = arith.constant 0 : i32
    return %c0_i32, %c0_i32_0 : i32, i32
  }
  func.func @transform_2(%arg0: i32) -> (i32, i32) {
    %c0_i32 = arith.constant 0 : i32
    %c0_i32_0 = arith.constant 0 : i32
    %c0_i32_1 = arith.constant 0 : i32
    return %c0_i32, %c0_i32_0 : i32, i32
  }
  func.func @transform_3(%arg0: i32) -> (i32, i32, i32) {
    %c0_i32 = arith.constant 0 : i32
    %c0_i32_0 = arith.constant 0 : i32
    %c0_i32_1 = arith.constant 0 : i32
    %c0_i32_2 = arith.constant 0 : i32
    return %c0_i32, %c0_i32_0, %c0_i32_1 : i32, i32, i32
  }
  func.func @transform_4(%arg0: i32) -> (i32, i32) {
    %c0_i32 = arith.constant 0 : i32
    %c0_i32_0 = arith.constant 0 : i32
    %c0_i32_1 = arith.constant 0 : i32
    return %c0_i32, %c0_i32_0 : i32, i32
  }
  func.func @transform_5(%arg0: i32) -> (i32, i32) {
    %c0_i32 = arith.constant 0 : i32
    %c0_i32_0 = arith.constant 0 : i32
    %c0_i32_1 = arith.constant 0 : i32
    return %c0_i32, %c0_i32_0 : i32, i32
  }
  func.func @transform_6(%arg0: i32) -> (i32, i32) {
    %c0_i32 = arith.constant 0 : i32
    %c0_i32_0 = arith.constant 0 : i32
    %c0_i32_1 = arith.constant 0 : i32
    return %c0_i32, %c0_i32_0 : i32, i32
  }
  func.func @transform_7(%arg0: i32) -> (i32, i32) {
    %c0_i32 = arith.constant 0 : i32
    %c0_i32_0 = arith.constant 0 : i32
    return %arg0, %c0_i32 : i32, i32
  }
}

</mosaic_0001>

<llo_original>
// kernel: tpu_custom_call.1
$region0: #{tpu_custom_call.1}
  #allocation0 [shape = 'u32[]', space=smem, size = 0x4, offset = 0x4, fixed_abs, tag = 'smem constant byte address 0x4 - core index']
  #allocation1 [shape = 'u32[144,128]{1,0:T(1,128)}', space=vmem, size = 0x12000, scoped, tag = 'internal scratch']
  %s0 = inlined_call_operand.hbm [shape: f32[8,16], index: 0, kind: input, shape index: {}]
  %s1 = inlined_call_operand.hbm [shape: bf16[16,32], index: 1, kind: input, shape index: {}]
  %s2 = inlined_call_operand.hbm [shape: f32[1,32], index: 2, kind: input, shape index: {}]
  %s3 = inlined_call_operand.hbm [shape: bf16[2,32,32], index: 3, kind: input, shape index: {}]
  %s4 = inlined_call_operand.vmem [shape: f32[2,32], index: 4, kind: input, shape index: {}]
  %s5 = inlined_call_operand.vmem [shape: bf16[32,128], index: 5, kind: input, shape index: {}]
  %s6 = inlined_call_operand.vmem [shape: f32[1,128], index: 6, kind: input, shape index: {}]
  %s7 = inlined_call_operand.hbm [shape: f32[8,128], index: 7, kind: output, shape index: {}]
  %s8 = sld [smem:[#allocation0]]
  $region54: #{tpu_custom_call.1} parent=0
    _
  %s10 = ssub.s32 1, %s8
  %s11 = scalar_select 0, %s10, %s8
  $region1: #{tpu_custom_call.1} parent=0
    #allocation2 [shape = 'u8[4096]{0}', space=vmem, size = 0x1000, scoped, tag = 'input window, operand 0, single buffered']
    #allocation3 [shape = 's32[1]{0}', space=sflag, size = 0x4, scoped, tag = 'scoped memory for tpu_custom_call.1']
    #allocation4 [shape = 's32[1]{0}', space=sflag, size = 0x4, scoped, tag = 'scoped memory for tpu_custom_call.1']
    #allocation5 [shape = 'u8[4096]{0}', space=vmem, size = 0x1000, scoped, tag = 'input window, operand 1, single buffered']
    #allocation6 [shape = 's32[1]{0}', space=sflag, size = 0x4, scoped, tag = 'scoped memory for tpu_custom_call.1']
    #allocation7 [shape = 'u8[512]{0}', space=vmem, size = 0x400, scoped, tag = 'input window, operand 2, single buffered']
    #allocation8 [shape = 'u8[16384]{0}', space=vmem, size = 0x4000, scoped, tag = 'input window, operand 3, single buffered']
    #allocation9 [shape = 's32[1]{0}', space=sflag, size = 0x4, scoped, tag = 'scoped memory for tpu_custom_call.1']
    #allocation10 [shape = 'u8[4096]{0}', space=vmem, size = 0x1000, scoped, tag = 'output window, operand 0, single buffered']
    %12 = vsyncpa [#allocation3], 0
    %13 = vsyncpa [#allocation6], 0
    %14 = vsyncpa [#allocation9], 0
    %15 = vsyncpa [#allocation4], 0
    // Predicated region
    $region2: #{tpu_custom_call.1} parent=1 // pred_check
      _
    $region3: #{tpu_custom_call.1} parent=1 // pred_check_branch
      %17 = sbr.rel (0) target = $region5
    $region4: #{tpu_custom_call.1} parent=1 // pred_region
      %s19 = ssub.s32 128, 128
      %20 = vsyncadd [#allocation3], %s19
      %s22 = sshll.u32 [#allocation2], 4
      %s23 = int_to_ptr.vmem [resolvable:$true] %s22
      %25 = dma.hbm_to_vmem [thread:$0]  %s0, 128, %s23, [#allocation3]
    $region5: #{tpu_custom_call.1} parent=1 // pred_fallthru
      _
    // Predicated region
    $region6: #{tpu_custom_call.1} parent=1 // pred_check
      _
    $region7: #{tpu_custom_call.1} parent=1 // pred_check_branch
      %27 = sbr.rel (0) target = $region9
    $region8: #{tpu_custom_call.1} parent=1 // pred_region
      %s29 = ssub.s32 128, 128
      %30 = vsyncadd [#allocation6], %s29
      %s31 = sshll.u32 [#allocation5], 4
      %s32 = int_to_ptr.vmem [resolvable:$true] %s31
      %37 = dma.hbm_to_vmem [thread:$0]  %s1, 128, %s32, [#allocation6], 64, 64, 4
    $region9: #{tpu_custom_call.1} parent=1 // pred_fallthru
      _
    // Predicated region
    $region10: #{tpu_custom_call.1} parent=1 // pred_check
      _
    $region11: #{tpu_custom_call.1} parent=1 // pred_check_branch
      %39 = sbr.rel (0) target = $region13
    $region12: #{tpu_custom_call.1} parent=1 // pred_region
      %s41 = ssub.s32 16, 16
      %42 = vsyncadd [#allocation6], %s41
      %s44 = sshll.u32 [#allocation7], 4
      %s45 = int_to_ptr.vmem [resolvable:$true] %s44
      %47 = dma.hbm_to_vmem [thread:$0]  %s2, 16, %s45, [#allocation6]
    $region13: #{tpu_custom_call.1} parent=1 // pred_fallthru
      _
    // Predicated region
    $region14: #{tpu_custom_call.1} parent=1 // pred_check
      _
    $region15: #{tpu_custom_call.1} parent=1 // pred_check_branch
      %49 = sbr.rel (0) target = $region17
    $region16: #{tpu_custom_call.1} parent=1 // pred_region
      %s51 = ssub.s32 512, 512
      %52 = vsyncadd [#allocation9], %s51
      %s53 = sshll.u32 [#allocation8], 4
      %s54 = int_to_ptr.vmem [resolvable:$true] %s53
      %59 = dma.hbm_to_vmem [thread:$0]  %s3, 512, %s54, [#allocation9], 64, 64, 4
    $region17: #{tpu_custom_call.1} parent=1 // pred_fallthru
      _
    // Predicated region
    $region18: #{tpu_custom_call.1} parent=1 // pred_check
      _
    $region19: #{tpu_custom_call.1} parent=1 // pred_check_branch
      %61 = sbr.rel (0) target = $region21
    $region20: #{tpu_custom_call.1} parent=1 // pred_region
      _
    $region21: #{tpu_custom_call.1} parent=1 // pred_fallthru
      _
    // Predicated region
    $region22: #{tpu_custom_call.1} parent=1 // pred_check
      _
    $region23: #{tpu_custom_call.1} parent=1 // pred_check_branch
      %63 = sbr.rel (0) target = $region25
    $region24: #{tpu_custom_call.1} parent=1 // pred_region
      _
    $region25: #{tpu_custom_call.1} parent=1 // pred_fallthru
      _
    // Predicated region
    $region26: #{tpu_custom_call.1} parent=1 // pred_check
      _
    $region27: #{tpu_custom_call.1} parent=1 // pred_check_branch
      %65 = sbr.rel (0) target = $region29
    $region28: #{tpu_custom_call.1} parent=1 // pred_region
      _
    $region29: #{tpu_custom_call.1} parent=1 // pred_fallthru
      _
    // Predicated region
    $region30: #{tpu_custom_call.1} parent=1 // pred_check
      _
    $region31: #{tpu_custom_call.1} parent=1 // pred_check_branch
      %67 = sbr.rel (0) target = $region33
    $region32: #{tpu_custom_call.1} parent=1 // pred_region
      %68 = dma.done [#allocation3], 128
    $region33: #{tpu_custom_call.1} parent=1 // pred_fallthru
      _
    // Predicated region
    $region34: #{tpu_custom_call.1} parent=1 // pred_check
      _
    $region35: #{tpu_custom_call.1} parent=1 // pred_check_branch
      %70 = sbr.rel (0) target = $region37
    $region36: #{tpu_custom_call.1} parent=1 // pred_region
      %71 = dma.done [#allocation6], 128
    $region37: #{tpu_custom_call.1} parent=1 // pred_fallthru
      _
    // Predicated region
    $region38: #{tpu_custom_call.1} parent=1 // pred_check
      _
    $region39: #{tpu_custom_call.1} parent=1 // pred_check_branch
      %73 = sbr.rel (0) target = $region41
    $region40: #{tpu_custom_call.1} parent=1 // pred_region
      %74 = dma.done [#allocation6], 16
    $region41: #{tpu_custom_call.1} parent=1 // pred_fallthru
      _
    // Predicated region
    $region42: #{tpu_custom_call.1} parent=1 // pred_check
      _
    $region43: #{tpu_custom_call.1} parent=1 // pred_check_branch
      %76 = sbr.rel (0) target = $region45
    $region44: #{tpu_custom_call.1} parent=1 // pred_region
      %77 = dma.done [#allocation9], 512
    $region45: #{tpu_custom_call.1} parent=1 // pred_fallthru
      _
    %v79 = vld [vmem:[#allocation2] sm:$0xff]
    %v80 = vpack.c.bf16 %v79, %v79
    %v81 = vld [vmem:[#allocation5] sm:$0xf]
    %v82 = vld [vmem:[#allocation5 + $0x4] sm:$0xf]
    %v83 = vld [vmem:[#allocation7] sm:$0x1]
    %v85 = vlaneseq
    %v86 = vshrl.u32 %v85, 7
    %v87 = vsub.s32 0, %v86
    %v88 = vrot.slane %v83, %v87
    %v92 = vunpack.c.l.b16 %v81
    %v93 = vunpack.c.l.b16 %v82
    %v94 = vpack.c.b16 %v93, %v92
    %vm96 = vcmask 130048
    %v98 = vsel %vm96, %v80, 0
    %100 = vmatprep.subr.bf16.mxu0 0
    %101 = vmatpush1.bf16.msra.mxu0 %v94
    %102 = vmatprep.subr.bf16.mxu0 0
    %103 = vmatpush1.bf16.msra.mxu0 0
    %104 = vmatprep.subr.bf16.mxu0 0
    %105 = vmatpush1.bf16.msra.mxu0 0
    %106 = vmatprep.subr.bf16.mxu0 0
    %107 = vmatpush1.bf16.msra.mxu0 0
    %108 = vmatprep.subr.bf16.mxu0 0
    %109 = vmatpush1.bf16.msra.mxu0 0
    %110 = vmatprep.subr.bf16.mxu0 0
    %111 = vmatpush1.bf16.msra.mxu0 0
    %112 = vmatprep.subr.bf16.mxu0 0
    %113 = vmatpush1.bf16.msra.mxu0 0
    %114 = vmatprep.subr.bf16.mxu0 0
    %115 = vmatpush1.bf16.msra.mxu0 0
    %116 = vmatprep.subr.bf16.mxu0 0
    %117 = vmatpush1.bf16.msra.mxu0 0
    %118 = vmatprep.subr.bf16.mxu0 0
    %119 = vmatpush1.bf16.msra.mxu0 0
    %120 = vmatprep.subr.bf16.mxu0 0
    %121 = vmatpush1.bf16.msra.mxu0 0
    %122 = vmatprep.subr.bf16.mxu0 0
    %123 = vmatpush1.bf16.msra.mxu0 0
    %124 = vmatprep.subr.bf16.mxu0 0
    %125 = vmatpush1.bf16.msra.mxu0 0
    %126 = vmatprep.subr.bf16.mxu0 0
    %127 = vmatpush1.bf16.msra.mxu0 0
    %128 = vmatprep.subr.bf16.mxu0 0
    %129 = vmatpush1.bf16.msra.mxu0 0
    %130 = vmatprep.subr.bf16.mxu0 0
    %131 = vmatpush1.bf16.msra.mxu0 0
    %132 = vmatprep.mubr.bf16.mxu0 0
    %133 = vmatmul.mubr.bf16.gmra.mrb[0].mxu0 %v98
    %v134 = vpop.f32.mrb[0].mxu0
    %v135 = vadd.f32 %v88, %v134
    %v136 = vpop.f32.mrb[0].mxu0
    %v137 = vpop.f32.mrb[0].mxu0
    %v138 = vpop.f32.mrb[0].mxu0
    %139 = vdwg.mxu0
    %v140 = vmax.f32 %v135, 0.0
    %v141 = vld [vmem:[%s4] sm:$0x3]
    %v142 = vpack.c.bf16 %v140, %v140
    %v143 = vld [vmem:[#allocation8] sm:$0xf]
    %v144 = vld [vmem:[#allocation8 + $0x4] sm:$0xf]
    %v145 = vld [vmem:[#allocation8 + $0x8] sm:$0xf]
    %v146 = vld [vmem:[#allocation8 + $0xc] sm:$0xf]
    %v147 = vlaneseq
    %v148 = vshrl.u32 %v147, 7
    %v149 = vsub.s32 0, %v148
    %v150 = vrot.slane %v141, %v149
    %v155 = vunpack.c.l.b16 %v143
    %v156 = vunpack.c.l.b16 %v144
    %v157 = vunpack.c.l.b16 %v145
    %v158 = vunpack.c.l.b16 %v146
    %v159 = vpack.c.b16 %v156, %v155
    %v160 = vpack.c.b16 %v158, %v157
    %vm163 = vcmask 261120
    %v165 = vsel %vm163, %v142, 0
    %167 = vmatprep.subr.bf16.mxu0 0
    %168 = vmatpush1.bf16.msra.mxu0 %v159
    %169 = vmatprep.subr.bf16.mxu0 0
    %170 = vmatpush1.bf16.msra.mxu0 %v160
    %171 = vmatprep.subr.bf16.mxu0 0
    %172 = vmatpush1.bf16.msra.mxu0 0
    %173 = vmatprep.subr.bf16.mxu0 0
    %174 = vmatpush1.bf16.msra.mxu0 0
    %175 = vmatprep.subr.bf16.mxu0 0
    %176 = vmatpush1.bf16.msra.mxu0 0
    %177 = vmatprep.subr.bf16.mxu0 0
    %178 = vmatpush1.bf16.msra.mxu0 0
    %179 = vmatprep.subr.bf16.mxu0 0
    %180 = vmatpush1.bf16.msra.mxu0 0
    %181 = vmatprep.subr.bf16.mxu0 0
    %182 = vmatpush1.bf16.msra.mxu0 0
    %183 = vmatprep.subr.bf16.mxu0 0
    %184 = vmatpush1.bf16.msra.mxu0 0
    %185 = vmatprep.subr.bf16.mxu0 0
    %186 = vmatpush1.bf16.msra.mxu0 0
    %187 = vmatprep.subr.bf16.mxu0 0
    %188 = vmatpush1.bf16.msra.mxu0 0
    %189 = vmatprep.subr.bf16.mxu0 0
    %190 = vmatpush1.bf16.msra.mxu0 0
    %191 = vmatprep.subr.bf16.mxu0 0
    %192 = vmatpush1.bf16.msra.mxu0 0
    %193 = vmatprep.subr.bf16.mxu0 0
    %194 = vmatpush1.bf16.msra.mxu0 0
    %195 = vmatprep.subr.bf16.mxu0 0
    %196 = vmatpush1.bf16.msra.mxu0 0
    %197 = vmatprep.subr.bf16.mxu0 0
    %198 = vmatpush1.bf16.msra.mxu0 0
    %199 = vmatprep.mubr.bf16.mxu0 0
    %200 = vmatmul.mubr.bf16.gmra.mrb[0].mxu0 %v165
    %v201 = vpop.f32.mrb[0].mxu0
    %v202 = vadd.f32 %v150, %v201
    %v203 = vpop.f32.mrb[0].mxu0
    %v204 = vpop.f32.mrb[0].mxu0
    %v205 = vpop.f32.mrb[0].mxu0
    %206 = vdwg.mxu0
    %v207 = vmax.f32 %v202, 0.0
    %v208 = vadd.f32 %v140, %v207
    %v209 = vpack.c.bf16 %v208, %v208
    %s210 = scalar_lea.vmem [#allocation8], 16
    %v211 = vld [vmem:[%s210] sm:$0xf]
    %v212 = vld [vmem:[%s210 + $0x4] sm:$0xf]
    %v213 = vld [vmem:[%s210 + $0x8] sm:$0xf]
    %v214 = vld [vmem:[%s210 + $0xc] sm:$0xf]
    %v215 = vlaneseq
    %v216 = vshrl.u32 %v215, 7
    %v217 = vsub.s32 1, %v216
    %v218 = vrot.slane %v141, %v217
    %v223 = vunpack.c.l.b16 %v211
    %v224 = vunpack.c.l.b16 %v212
    %v225 = vunpack.c.l.b16 %v213
    %v226 = vunpack.c.l.b16 %v214
    %v227 = vpack.c.b16 %v224, %v223
    %v228 = vpack.c.b16 %v226, %v225
    %v232 = vsel %vm163, %v209, 0
    %234 = vmatprep.subr.bf16.mxu0 0
    %235 = vmatpush1.bf16.msra.mxu0 %v227
    %236 = vmatprep.subr.bf16.mxu0 0
    %237 = vmatpush1.bf16.msra.mxu0 %v228
    %238 = vmatprep.subr.bf16.mxu0 0
    %239 = vmatpush1.bf16.msra.mxu0 0
    %240 = vmatprep.subr.bf16.mxu0 0
    %241 = vmatpush1.bf16.msra.mxu0 0
    %242 = vmatprep.subr.bf16.mxu0 0
    %243 = vmatpush1.bf16.msra.mxu0 0
    %244 = vmatprep.subr.bf16.mxu0 0
    %245 = vmatpush1.bf16.msra.mxu0 0
    %246 = vmatprep.subr.bf16.mxu0 0
    %247 = vmatpush1.bf16.msra.mxu0 0
    %248 = vmatprep.subr.bf16.mxu0 0
    %249 = vmatpush1.bf16.msra.mxu0 0
    %250 = vmatprep.subr.bf16.mxu0 0
    %251 = vmatpush1.bf16.msra.mxu0 0
    %252 = vmatprep.subr.bf16.mxu0 0
    %253 = vmatpush1.bf16.msra.mxu0 0
    %254 = vmatprep.subr.bf16.mxu0 0
    %255 = vmatpush1.bf16.msra.mxu0 0
    %256 = vmatprep.subr.bf16.mxu0 0
    %257 = vmatpush1.bf16.msra.mxu0 0
    %258 = vmatprep.subr.bf16.mxu0 0
    %259 = vmatpush1.bf16.msra.mxu0 0
    %260 = vmatprep.subr.bf16.mxu0 0
    %261 = vmatpush1.bf16.msra.mxu0 0
    %262 = vmatprep.subr.bf16.mxu0 0
    %263 = vmatpush1.bf16.msra.mxu0 0
    %264 = vmatprep.subr.bf16.mxu0 0
    %265 = vmatpush1.bf16.msra.mxu0 0
    %266 = vmatprep.mubr.bf16.mxu0 0
    %267 = vmatmul.mubr.bf16.gmra.mrb[0].mxu0 %v232
    %v268 = vpop.f32.mrb[0].mxu0
    %v269 = vadd.f32 %v218, %v268
    %v270 = vpop.f32.mrb[0].mxu0
    %v271 = vpop.f32.mrb[0].mxu0
    %v272 = vpop.f32.mrb[0].mxu0
    %273 = vdwg.mxu0
    %v274 = vmax.f32 %v269, 0.0
    %v275 = vadd.f32 %v208, %v274
    %v276 = vpack.c.bf16 %v275, %v275
    %v277 = vld [vmem:[%s5] sm:$0xf]
    %v278 = vld [vmem:[%s5 + $0x4] sm:$0xf]
    %v279 = vld [vmem:[%s5 + $0x8] sm:$0xf]
    %v280 = vld [vmem:[%s5 + $0xc] sm:$0xf]
    %v281 = vld [vmem:[%s6] sm:$0x1]
    %v283 = vlaneseq
    %v284 = vshrl.u32 %v283, 7
    %v285 = vsub.s32 0, %v284
    %v286 = vrot.slane %v281, %v285
    %v292 = vunpack.c.l.b16 %v277
    %v293 = vunpack.c.l.b16 %v278
    %v294 = vunpack.c.l.b16 %v279
    %v295 = vunpack.c.l.b16 %v280
    %v296 = vpack.c.b16 %v293, %v292
    %v297 = vpack.c.b16 %v295, %v294
    %v301 = vsel %vm163, %v276, 0
    %303 = vmatprep.subr.bf16.mxu0 0
    %304 = vmatpush1.bf16.msra.mxu0 %v296
    %305 = vmatprep.subr.bf16.mxu0 0
    %306 = vmatpush1.bf16.msra.mxu0 %v297
    %307 = vmatprep.subr.bf16.mxu0 0
    %308 = vmatpush1.bf16.msra.mxu0 0
    %309 = vmatprep.subr.bf16.mxu0 0
    %310 = vmatpush1.bf16.msra.mxu0 0
    %311 = vmatprep.subr.bf16.mxu0 0
    %312 = vmatpush1.bf16.msra.mxu0 0
    %313 = vmatprep.subr.bf16.mxu0 0
    %314 = vmatpush1.bf16.msra.mxu0 0
    %315 = vmatprep.subr.bf16.mxu0 0
    %316 = vmatpush1.bf16.msra.mxu0 0
    %317 = vmatprep.subr.bf16.mxu0 0
    %318 = vmatpush1.bf16.msra.mxu0 0
    %319 = vmatprep.subr.bf16.mxu0 0
    %320 = vmatpush1.bf16.msra.mxu0 0
    %321 = vmatprep.subr.bf16.mxu0 0
    %322 = vmatpush1.bf16.msra.mxu0 0
    %323 = vmatprep.subr.bf16.mxu0 0
    %324 = vmatpush1.bf16.msra.mxu0 0
    %325 = vmatprep.subr.bf16.mxu0 0
    %326 = vmatpush1.bf16.msra.mxu0 0
    %327 = vmatprep.subr.bf16.mxu0 0
    %328 = vmatpush1.bf16.msra.mxu0 0
    %329 = vmatprep.subr.bf16.mxu0 0
    %330 = vmatpush1.bf16.msra.mxu0 0
    %331 = vmatprep.subr.bf16.mxu0 0
    %332 = vmatpush1.bf16.msra.mxu0 0
    %333 = vmatprep.subr.bf16.mxu0 0
    %334 = vmatpush1.bf16.msra.mxu0 0
    %335 = vmatprep.mubr.bf16.mxu0 0
    %336 = vmatmul.mubr.bf16.gmra.mrb[0].mxu0 %v301
    %v337 = vpop.f32.mrb[0].mxu0
    %v338 = vadd.f32 %v286, %v337
    %v339 = vpop.f32.mrb[0].mxu0
    %v340 = vpop.f32.mrb[0].mxu0
    %v341 = vpop.f32.mrb[0].mxu0
    %342 = vdwg.mxu0
    %343 = vst [vmem:[#allocation10] sm:$0xff] %v338
    // Predicated region
    $region46: #{tpu_custom_call.1} parent=1 // pred_check
      _
    $region47: #{tpu_custom_call.1} parent=1 // pred_check_branch
      %345 = sbr.rel (0) target = $region49
    $region48: #{tpu_custom_call.1} parent=1 // pred_region
      %s347 = ssub.s32 128, 128
      %348 = vsyncadd [#allocation4], %s347
      %s350 = sshll.u32 [#allocation10], 4
      %s351 = int_to_ptr.vmem [resolvable:$true] %s350
      %353 = dma.vmem_to_hbm [thread:$0]  %s351, 128, %s7, [#allocation4]
    $region49: #{tpu_custom_call.1} parent=1 // pred_fallthru
      _
    // Predicated region
    $region50: #{tpu_custom_call.1} parent=1 // pred_check
      _
    $region51: #{tpu_custom_call.1} parent=1 // pred_check_branch
      %355 = sbr.rel (0) target = $region53
    $region52: #{tpu_custom_call.1} parent=1 // pred_region
      %356 = dma.done [#allocation4], 128
    $region53: #{tpu_custom_call.1} parent=1 // pred_fallthru
      _
    %357 = vsyncpa [#allocation3], 1
    %358 = vsyncpa [#allocation6], 1
    %359 = vsyncpa [#allocation9], 1
    %360 = vsyncpa [#allocation4], 1

</llo_original>
